<compile_context>
chip_gen: v7x
topology: tpu7x:2x2x1
jax: 0.10.0
libtpu: 0.0.40
codegen_flags: <defaults>
</compile_context>

<pallas_src>
import functools

import jax
import jax.numpy as jnp
from jax import lax
from jax.experimental import pallas as pl
from jax.experimental.pallas import tpu as pltpu

_LANE = 128    # lane width: batch tiles are multiples of this
_CHUNK = 512   # lanes per inner-loop step (keeps h1/h2/logits in vregs)


def _round_up(n, m):
    return ((n + m - 1) // m) * m


def _net_kernel(xT_ref, w1_ref, w2_ref, b2_ref, w3_ref, outT_ref, *, chunk):
    """One batch tile of softmax(W3 @ relu(W2 @ relu(W1 @ x^T) + b2)).

    Feature-major (transposed) layout: batch lives on the 128-wide lane axis, so
    every intermediate and the output tile are lane-dense (no masked partial stores).
    """
    # Weights are tiny and resident across the grid (constant index_map); cast the
    # MXU operands to bf16 here -- accumulation stays f32.
    w1 = w1_ref[...]                              # [10, 2]  f32
    w2 = w2_ref[...].astype(jnp.bfloat16)         # [50, 10] bf16 (MXU lhs)
    b2 = b2_ref[...]                              # [50, 1]  f32
    w3 = w3_ref[...].astype(jnp.bfloat16)         # [4, 50]  bf16 (MXU lhs)
    w1c0 = w1[:, 0:1]                             # [10, 1]
    w1c1 = w1[:, 1:2]                             # [10, 1]

    def compute(xT):                              # xT: [2, C] f32
        # fc1 (in_features=2) on the VPU: two broadcast FMAs + ReLU.
        h1 = jnp.maximum(w1c0 * xT[0:1, :] + w1c1 * xT[1:2, :], 0.0)      # [10, C]
        # fc2 + bias + ReLU on the MXU (bf16 operands, f32 accumulation).
        h2 = jnp.dot(w2, h1.astype(jnp.bfloat16),
                     preferred_element_type=jnp.float32)                   # [50, C]
        h2 = jnp.maximum(h2 + b2, 0.0)
        # fc3 on the MXU.
        logits = jnp.dot(w3, h2.astype(jnp.bfloat16),
                         preferred_element_type=jnp.float32)               # [4, C]
        # Numerically-stable softmax over the class axis (sublanes == dim=1).
        m = jnp.max(logits, axis=0, keepdims=True)
        e = jnp.exp(logits - m)
        denom = jnp.sum(e, axis=0, keepdims=True)
        return e / denom                          # exact divide: rows sum to 1

    tb = xT_ref.shape[1]
    n_chunks = tb // chunk                        # static
    if n_chunks == 1:
        outT_ref[...] = compute(xT_ref[...]).astype(outT_ref.dtype)
    else:
        def body(c, carry):
            off = pl.multiple_of(c * chunk, _LANE)
            outT_ref[:, pl.ds(off, chunk)] = compute(
                xT_ref[:, pl.ds(off, chunk)]).astype(outT_ref.dtype)
            return carry
        lax.fori_loop(0, n_chunks, body, 0)


@functools.partial(jax.jit, static_argnames=("tile_b",))
def net_forward(x, w1, w2, b2, w3, *, tile_b=8192):
    """Net.forward.  x: [B, 2]; PyTorch-layout weights: w1 [10,2], w2 [50,10],
    b2 [50], w3 [4,50].  Returns softmax probabilities [B, 4] (float32)."""
    B = x.shape[0]

    # Static batch-tile choice:
    #  * lane (128) and chunk (512) aligned so the inner loop divides evenly,
    #  * >= 2 grid steps when the batch allows it (v7x megacore sharding),
    #  * capped by tile_b (8192 -> ~0.5 MiB of pipelined VMEM, far under the
    #    32 MiB scoped default; raise vmem_limit_bytes only for tiles >~32K).
    B_lane = _round_up(B, _LANE)
    if B_lane <= _CHUNK:
        tb = B_lane
    else:
        tb = min(_round_up(tile_b, _CHUNK), _round_up(pl.cdiv(B_lane, 2), _CHUNK))
    num_tiles = pl.cdiv(B, tb)
    B_pad = num_tiles * tb
    chunk = min(_CHUNK, tb)

    # Single pad + single transpose (layout plumbing only).  Callers that own the
    # layout can pass x already as [2, B] and consume y as [4, B] to skip both.
    x32 = x.astype(jnp.float32)
    if B_pad != B:
        x32 = jnp.pad(x32, ((0, B_pad - B), (0, 0)))
    xT = x32.T                                          # [2, B_pad]
    b2_col = b2.astype(jnp.float32).reshape(-1, 1)      # [50, 1]

    kernel = functools.partial(_net_kernel, chunk=chunk)
    outT = pl.pallas_call(
        kernel,
        out_shape=jax.ShapeDtypeStruct((4, B_pad), jnp.float32),
        grid=(num_tiles,),
        in_specs=[
            pl.BlockSpec((2, tb), lambda i: (0, i)),        # x^T tile (pipelined)
            pl.BlockSpec(w1.shape, lambda i: (0, 0)),       # constant-index blocks:
            pl.BlockSpec(w2.shape, lambda i: (0, 0)),       #   fetched once, resident
            pl.BlockSpec(b2_col.shape, lambda i: (0, 0)),   #   across the batch grid
            pl.BlockSpec(w3.shape, lambda i: (0, 0)),
        ],
        out_specs=pl.BlockSpec((4, tb), lambda i: (0, i)),  # lane-dense output tile
        compiler_params=pltpu.CompilerParams(
            dimension_semantics=("parallel",),              # megacore sharding on v7x
        ),
    )(xT,
      w1.astype(jnp.float32),
      w2.astype(jnp.float32),
      b2_col,
      w3.astype(jnp.float32))

    return outT[:, :B].T                                    # back to [B, 4]


def _ref_f32(x, w1, w2, b2, w3):
    h = jnp.maximum(x @ w1.T, 0.0)
    h = jnp.maximum(h @ w2.T + b2, 0.0)
    return jax.nn.softmax(h @ w3.T, axis=1)


def _ref_matched(x, w1, w2, b2, w3):
    # Mirrors the kernel's precision choices: bf16 MXU operands, f32 accumulation.
    bf = jnp.bfloat16
    h1 = jnp.maximum(x @ w1.T, 0.0).astype(bf)
    h2 = jnp.dot(h1, w2.astype(bf).T, preferred_element_type=jnp.float32) + b2
    h2 = jnp.maximum(h2, 0.0)
    logits = jnp.dot(h2.astype(bf), w3.astype(bf).T, preferred_element_type=jnp.float32)
    return jax.nn.softmax(logits, axis=1)


if __name__ == "__main__":
    key = jax.random.PRNGKey(0)
    kx, k1, k2, k3, k4, kx2 = jax.random.split(key, 6)

    def lin_w(k, fan_out, fan_in):
        bound = 1.0 / (fan_in ** 0.5)
        return jax.random.uniform(k, (fan_out, fan_in), jnp.float32, -bound, bound)

    w1 = lin_w(k1, 10, 2)                                    # fc1.weight
    w2 = lin_w(k2, 50, 10)                                   # fc2.fc.weight
    b2 = jax.random.uniform(k3, (50,), jnp.float32,
                            -1.0 / (10.0 ** 0.5), 1.0 / (10.0 ** 0.5))  # fc2.fc.bias
    w3 = lin_w(k4, 4, 50)                                    # fc3.weight
    # no_grad_param = tensor([2, 2]).long() is never used in forward -> omitted.

    # B=8: small demo (single tile, single chunk).
    # B=1200: exercises the multi-tile grid and the inner chunk loop.
    for B, kb in ((8, kx), (1200, kx2)):
        x = jax.random.normal(kb, (B, 2), dtype=jnp.float32)
        out = net_forward(x, w1, w2, b2, w3)
        jax.block_until_ready(out)

        assert out.shape == (B, 4)
        sums = jnp.sum(out, axis=1)
        assert bool(jnp.allclose(sums, 1.0, atol=1e-3)), \
            float(jnp.max(jnp.abs(sums - 1.0)))
        ref_m = _ref_matched(x, w1, w2, b2, w3)
        assert bool(jnp.allclose(out, ref_m, atol=1e-3)), \
            float(jnp.max(jnp.abs(out - ref_m)))
        ref = _ref_f32(x, w1, w2, b2, w3)
        assert bool(jnp.allclose(out, ref, atol=2e-2)), \
            float(jnp.max(jnp.abs(out - ref)))

    print("KERNEL_OK")
</pallas_src>

<mosaic_0001>
module attributes {stable_mosaic.version = 11 : i64} {
  func.func @_net_kernel(%arg0: i32, %arg1: memref<2x128xf32, #tpu.memory_space<vmem>>, %arg2: memref<10x2xf32, #tpu.memory_space<vmem>>, %arg3: memref<50x10xf32, #tpu.memory_space<vmem>>, %arg4: memref<50x1xf32, #tpu.memory_space<vmem>>, %arg5: memref<4x50xf32, #tpu.memory_space<vmem>>, %arg6: memref<4x128xf32, #tpu.memory_space<vmem>>) attributes {dimension_semantics = [#tpu.dimension_semantics<parallel>], iteration_bounds = array<i64: 1>, scalar_prefetch = 0 : i64, scratch_operands = 0 : i64, tpu.core_type = #tpu.core_type<tc>, window_params = [{transform_indices = @transform_0, window_bounds = array<i64: 2, 128>}, {pipeline_mode = #tpu.pipeline_mode<synchronous>, transform_indices = @transform_1, window_bounds = array<i64: 10, 2>}, {pipeline_mode = #tpu.pipeline_mode<synchronous>, transform_indices = @transform_2, window_bounds = array<i64: 50, 10>}, {pipeline_mode = #tpu.pipeline_mode<synchronous>, transform_indices = @transform_3, window_bounds = array<i64: 50, 1>}, {pipeline_mode = #tpu.pipeline_mode<synchronous>, transform_indices = @transform_4, window_bounds = array<i64: 4, 50>}, {transform_indices = @transform_5, window_bounds = array<i64: 4, 128>}]} {
    %c0 = arith.constant 0 : index
    %c0_0 = arith.constant 0 : index
    %0 = vector.load %arg2[%c0, %c0_0] : memref<10x2xf32, #tpu.memory_space<vmem>>, vector<10x2xf32>
    %c0_1 = arith.constant 0 : index
    %c0_2 = arith.constant 0 : index
    %1 = vector.load %arg3[%c0_1, %c0_2] : memref<50x10xf32, #tpu.memory_space<vmem>>, vector<50x10xf32>
    %2 = arith.truncf %1 : vector<50x10xf32> to vector<50x10xbf16>
    %c0_3 = arith.constant 0 : index
    %c0_4 = arith.constant 0 : index
    %3 = vector.load %arg4[%c0_3, %c0_4] : memref<50x1xf32, #tpu.memory_space<vmem>>, vector<50x1xf32>
    %c0_5 = arith.constant 0 : index
    %c0_6 = arith.constant 0 : index
    %4 = vector.load %arg5[%c0_5, %c0_6] : memref<4x50xf32, #tpu.memory_space<vmem>>, vector<4x50xf32>
    %5 = arith.truncf %4 : vector<4x50xf32> to vector<4x50xbf16>
    %6 = vector.extract_strided_slice %0 {offsets = [0, 0], sizes = [10, 1], strides = [1, 1]} : vector<10x2xf32> to vector<10x1xf32>
    %7 = vector.extract_strided_slice %0 {offsets = [0, 1], sizes = [10, 1], strides = [1, 1]} : vector<10x2xf32> to vector<10x1xf32>
    %c0_7 = arith.constant 0 : index
    %c0_8 = arith.constant 0 : index
    %8 = vector.load %arg1[%c0_7, %c0_8] : memref<2x128xf32, #tpu.memory_space<vmem>>, vector<2x128xf32>
    %9 = vector.extract_strided_slice %8 {offsets = [0, 0], sizes = [1, 128], strides = [1, 1]} : vector<2x128xf32> to vector<1x128xf32>
    %10 = vector.broadcast %6 : vector<10x1xf32> to vector<10x128xf32>
    %11 = vector.broadcast %9 : vector<1x128xf32> to vector<10x128xf32>
    %12 = arith.mulf %10, %11 : vector<10x128xf32>
    %13 = vector.extract_strided_slice %8 {offsets = [1, 0], sizes = [1, 128], strides = [1, 1]} : vector<2x128xf32> to vector<1x128xf32>
    %14 = vector.broadcast %7 : vector<10x1xf32> to vector<10x128xf32>
    %15 = vector.broadcast %13 : vector<1x128xf32> to vector<10x128xf32>
    %16 = arith.mulf %14, %15 : vector<10x128xf32>
    %17 = arith.addf %12, %16 : vector<10x128xf32>
    %cst = arith.constant 0.000000e+00 : f32
    %18 = vector.broadcast %cst : f32 to vector<10x128xf32>
    %19 = arith.maximumf %17, %18 : vector<10x128xf32>
    %20 = arith.truncf %19 : vector<10x128xf32> to vector<10x128xbf16>
    %cst_9 = arith.constant dense<0.000000e+00> : vector<50x128xf32>
    %21 = tpu.matmul %2, %20, %cst_9 {dimension_numbers = #tpu.dot_dimension_numbers<[1], [0], [0], [1], [0, 0, 1, 1], [], []>} : vector<50x10xbf16>, vector<10x128xbf16>, vector<50x128xf32> -> vector<50x128xf32>
    %22 = vector.broadcast %3 : vector<50x1xf32> to vector<50x128xf32>
    %23 = arith.addf %21, %22 : vector<50x128xf32>
    %cst_10 = arith.constant 0.000000e+00 : f32
    %24 = vector.broadcast %cst_10 : f32 to vector<50x128xf32>
    %25 = arith.maximumf %23, %24 : vector<50x128xf32>
    %26 = arith.truncf %25 : vector<50x128xf32> to vector<50x128xbf16>
    %cst_11 = arith.constant dense<0.000000e+00> : vector<4x128xf32>
    %27 = tpu.matmul %5, %26, %cst_11 {dimension_numbers = #tpu.dot_dimension_numbers<[1], [0], [0], [1], [0, 0, 1, 1], [], []>} : vector<4x50xbf16>, vector<50x128xbf16>, vector<4x128xf32> -> vector<4x128xf32>
    %cst_12 = arith.constant dense<0xFF800000> : vector<128xf32>
    %28 = vector.multi_reduction <maximumf>, %27, %cst_12 [0] : vector<4x128xf32> to vector<128xf32>
    %29 = vector.shape_cast %28 : vector<128xf32> to vector<1x128xf32>
    %30 = vector.broadcast %29 : vector<1x128xf32> to vector<4x128xf32>
    %31 = arith.subf %27, %30 : vector<4x128xf32>
    %32 = math.exp %31 : vector<4x128xf32>
    %cst_13 = arith.constant dense<0.000000e+00> : vector<128xf32>
    %33 = vector.multi_reduction <add>, %32, %cst_13 [0] : vector<4x128xf32> to vector<128xf32>
    %34 = vector.shape_cast %33 : vector<128xf32> to vector<1x128xf32>
    %35 = vector.broadcast %34 : vector<1x128xf32> to vector<4x128xf32>
    %36 = arith.divf %32, %35 : vector<4x128xf32>
    %c0_14 = arith.constant 0 : index
    %c0_15 = arith.constant 0 : index
    %37 = vector.load %arg6[%c0_14, %c0_15] : memref<4x128xf32, #tpu.memory_space<vmem>>, vector<4x128xf32>
    tpu.vector_store %arg6[%c0_14, %c0_15], %36 {strides = array<i32>} : memref<4x128xf32, #tpu.memory_space<vmem>>, vector<4x128xf32>,
    return
  }
  func.func @transform_0(%arg0: i32) -> (i32, i32) {
    %c0_i32 = arith.constant 0 : i32
    %c0_i32_0 = arith.constant 0 : i32
    return %c0_i32, %arg0 : i32, i32
  }
  func.func @transform_1(%arg0: i32) -> (i32, i32) {
    %c0_i32 = arith.constant 0 : i32
    %c0_i32_0 = arith.constant 0 : i32
    %c0_i32_1 = arith.constant 0 : i32
    return %c0_i32, %c0_i32_0 : i32, i32
  }
  func.func @transform_2(%arg0: i32) -> (i32, i32) {
    %c0_i32 = arith.constant 0 : i32
    %c0_i32_0 = arith.constant 0 : i32
    %c0_i32_1 = arith.constant 0 : i32
    return %c0_i32, %c0_i32_0 : i32, i32
  }
  func.func @transform_3(%arg0: i32) -> (i32, i32) {
    %c0_i32 = arith.constant 0 : i32
    %c0_i32_0 = arith.constant 0 : i32
    %c0_i32_1 = arith.constant 0 : i32
    return %c0_i32, %c0_i32_0 : i32, i32
  }
  func.func @transform_4(%arg0: i32) -> (i32, i32) {
    %c0_i32 = arith.constant 0 : i32
    %c0_i32_0 = arith.constant 0 : i32
    %c0_i32_1 = arith.constant 0 : i32
    return %c0_i32, %c0_i32_0 : i32, i32
  }
  func.func @transform_5(%arg0: i32) -> (i32, i32) {
    %c0_i32 = arith.constant 0 : i32
    %c0_i32_0 = arith.constant 0 : i32
    return %c0_i32, %arg0 : i32, i32
  }
}

</mosaic_0001>

<llo_original>
// kernel: net_forward.1
$region0: #{net_forward.1}
  #allocation0 [shape = 'u32[]', space=smem, size = 0x4, offset = 0x4, fixed_abs, tag = 'smem constant byte address 0x4 - core index']
  #allocation1 [shape = 'u32[144,128]{1,0:T(1,128)}', space=vmem, size = 0x12000, scoped, tag = 'internal scratch']
  %s0 = inlined_call_operand.vmem [shape: f32[2,128], index: 0, kind: input, shape index: {}]
  %s1 = inlined_call_operand.vmem [shape: f32[10,2], index: 1, kind: input, shape index: {}]
  %s2 = inlined_call_operand.vmem [shape: f32[50,10], index: 2, kind: input, shape index: {}]
  %s3 = inlined_call_operand.vmem [shape: f32[50,1], index: 3, kind: input, shape index: {}]
  %s4 = inlined_call_operand.vmem [shape: f32[4,50], index: 4, kind: input, shape index: {}]
  %s5 = inlined_call_operand.vmem [shape: f32[4,128], index: 5, kind: output, shape index: {}]
  %s6 = sld [smem:[#allocation0]]
  $region30: #{net_forward.1} parent=0
    _
  %s8 = ssub.s32 1, %s6
  %s9 = scalar_select 0, %s8, %s6
  // Predicated region
  $region2: #{net_forward.1} parent=0 // pred_check
    _
  $region3: #{net_forward.1} parent=0 // pred_check_branch
    %11 = sbr.rel (0) target = $region5
  $region4: #{net_forward.1} parent=0 // pred_region
    _
  $region5: #{net_forward.1} parent=0 // pred_fallthru
    _
  // Predicated region
  $region6: #{net_forward.1} parent=0 // pred_check
    _
  $region7: #{net_forward.1} parent=0 // pred_check_branch
    %13 = sbr.rel (0) target = $region9
  $region8: #{net_forward.1} parent=0 // pred_region
    _
  $region9: #{net_forward.1} parent=0 // pred_fallthru
    _
  // Predicated region
  $region10: #{net_forward.1} parent=0 // pred_check
    _
  $region11: #{net_forward.1} parent=0 // pred_check_branch
    %15 = sbr.rel (0) target = $region13
  $region12: #{net_forward.1} parent=0 // pred_region
    _
  $region13: #{net_forward.1} parent=0 // pred_fallthru
    _
  // Predicated region
  $region14: #{net_forward.1} parent=0 // pred_check
    _
  $region15: #{net_forward.1} parent=0 // pred_check_branch
    %17 = sbr.rel (0) target = $region17
  $region16: #{net_forward.1} parent=0 // pred_region
    _
  $region17: #{net_forward.1} parent=0 // pred_fallthru
    _
  // Predicated region
  $region18: #{net_forward.1} parent=0 // pred_check
    _
  $region19: #{net_forward.1} parent=0 // pred_check_branch
    %19 = sbr.rel (0) target = $region21
  $region20: #{net_forward.1} parent=0 // pred_region
    _
  $region21: #{net_forward.1} parent=0 // pred_fallthru
    _
  %v21 = vld [vmem:[%s1] sm:$0xff]
  %v22 = vld [vmem:[%s1 + $0x8] sm:$0x3]
  %v23 = vld [vmem:[%s2] sm:$0xff]
  %v24 = vld [vmem:[%s2 + $0x8] sm:$0xff]
  %v25 = vld [vmem:[%s2 + $0x10] sm:$0xff]
  %v26 = vld [vmem:[%s2 + $0x18] sm:$0xff]
  %v27 = vld [vmem:[%s2 + $0x20] sm:$0xff]
  %v28 = vld [vmem:[%s2 + $0x28] sm:$0xff]
  %v29 = vld [vmem:[%s2 + $0x30] sm:$0x3]
  %v30 = vpack.c.bf16 %v24, %v23
  %v31 = vpack.c.bf16 %v26, %v25
  %v32 = vpack.c.bf16 %v28, %v27
  %v33 = vpack.c.bf16 %v29, %v29
  %v34 = vld [vmem:[%s3] sm:$0xff]
  %v35 = vld [vmem:[%s3 + $0x8] sm:$0xff]
  %v36 = vld [vmem:[%s3 + $0x10] sm:$0xff]
  %v37 = vld [vmem:[%s3 + $0x18] sm:$0xff]
  %v38 = vld [vmem:[%s3 + $0x20] sm:$0xff]
  %v39 = vld [vmem:[%s3 + $0x28] sm:$0xff]
  %v40 = vld [vmem:[%s3 + $0x30] sm:$0x3]
  %v41 = vld [vmem:[%s4] sm:$0xf]
  %v42 = vpack.c.bf16 %v41, %v41
  %v43 = vld [vmem:[%s0] sm:$0x3]
  %45 = vset.pattern.permute.xlu0 0
  %46 = vperm.xlu0 %45, %v21
  %v47 = vpop.permute.xlu0 %46
  %50 = vset.pattern.permute.xlu0 0
  %51 = vperm.xlu0 %50, %v22
  %v52 = vpop.permute.xlu0 %51
  %v54 = vlaneseq
  %v55 = vshrl.u32 %v54, 7
  %v56 = vsub.s32 0, %v55
  %v57 = vrot.slane %v43, %v56
  %v58 = vmul.f32 %v47, %v57
  %v59 = vmul.f32 %v52, %v57
  %60 = vset.pattern.permute.xlu0 1
  %61 = vperm.xlu0 %60, %v21
  %v62 = vpop.permute.xlu0 %61
  %64 = vset.pattern.permute.xlu0 1
  %65 = vperm.xlu0 %64, %v22
  %v66 = vpop.permute.xlu0 %65
  %v68 = vlaneseq
  %v69 = vshrl.u32 %v68, 7
  %v70 = vsub.s32 1, %v69
  %v71 = vrot.slane %v43, %v70
  %v72 = vmul.f32 %v62, %v71
  %v73 = vmul.f32 %v66, %v71
  %v74 = vadd.f32 %v58, %v72
  %v75 = vadd.f32 %v59, %v73
  %v76 = vmax.f32 %v74, 0.0
  %v77 = vmax.f32 %v75, 0.0
  %v78 = vpack.c.bf16 %v77, %v76
  %80 = vset.pattern.permute.xlu0 0
  %81 = vperm.xlu0 %80, %v34
  %v82 = vpop.permute.xlu0 %81
  %85 = vset.pattern.permute.xlu0 0
  %86 = vperm.xlu0 %85, %v35
  %v87 = vpop.permute.xlu0 %86
  %90 = vset.pattern.permute.xlu0 0
  %91 = vperm.xlu0 %90, %v36
  %v92 = vpop.permute.xlu0 %91
  %95 = vset.pattern.permute.xlu0 0
  %96 = vperm.xlu0 %95, %v37
  %v97 = vpop.permute.xlu0 %96
  %100 = vset.pattern.permute.xlu0 0
  %101 = vperm.xlu0 %100, %v38
  %v102 = vpop.permute.xlu0 %101
  %105 = vset.pattern.permute.xlu0 0
  %106 = vperm.xlu0 %105, %v39
  %v107 = vpop.permute.xlu0 %106
  %110 = vset.pattern.permute.xlu0 0
  %111 = vperm.xlu0 %110, %v40
  %v112 = vpop.permute.xlu0 %111
  %vm114 = vcmask 80896
  %v116 = vsel %vm114, %v30, 0
  %v119 = vsel %vm114, %v31, 0
  %v122 = vsel %vm114, %v32, 0
  %v125 = vsel %vm114, %v33, 0
  %vm127 = vcmask 1044480
  %v129 = vsel %vm127, %v78, 0
  %131 = vmatprep.subr.bf16.mxu0 0
  %132 = vmatpush1.bf16.msra.mxu0 %v129
  %133 = vmatprep.subr.bf16.mxu0 0
  %134 = vmatpush1.bf16.msra.mxu0 0
  %135 = vmatprep.subr.bf16.mxu0 0
  %136 = vmatpush1.bf16.msra.mxu0 0
  %137 = vmatprep.subr.bf16.mxu0 0
  %138 = vmatpush1.bf16.msra.mxu0 0
  %139 = vmatprep.subr.bf16.mxu0 0
  %140 = vmatpush1.bf16.msra.mxu0 0
  %141 = vmatprep.subr.bf16.mxu0 0
  %142 = vmatpush1.bf16.msra.mxu0 0
  %143 = vmatprep.subr.bf16.mxu0 0
  %144 = vmatpush1.bf16.msra.mxu0 0
  %145 = vmatprep.subr.bf16.mxu0 0
  %146 = vmatpush1.bf16.msra.mxu0 0
  %147 = vmatprep.subr.bf16.mxu0 0
  %148 = vmatpush1.bf16.msra.mxu0 0
  %149 = vmatprep.subr.bf16.mxu0 0
  %150 = vmatpush1.bf16.msra.mxu0 0
  %151 = vmatprep.subr.bf16.mxu0 0
  %152 = vmatpush1.bf16.msra.mxu0 0
  %153 = vmatprep.subr.bf16.mxu0 0
  %154 = vmatpush1.bf16.msra.mxu0 0
  %155 = vmatprep.subr.bf16.mxu0 0
  %156 = vmatpush1.bf16.msra.mxu0 0
  %157 = vmatprep.subr.bf16.mxu0 0
  %158 = vmatpush1.bf16.msra.mxu0 0
  %159 = vmatprep.subr.bf16.mxu0 0
  %160 = vmatpush1.bf16.msra.mxu0 0
  %161 = vmatprep.subr.bf16.mxu0 0
  %162 = vmatpush1.bf16.msra.mxu0 0
  %163 = vmatprep.mubr.bf16.mxu0 0
  %164 = vmatmul.mubr.bf16.gmra.mrb[0].mxu0 %v116
  %v165 = vpop.f32.mrb[0].mxu0
  %v166 = vadd.f32 %v82, %v165
  %v167 = vpop.f32.mrb[0].mxu0
  %v168 = vpop.f32.mrb[0].mxu0
  %v169 = vadd.f32 %v87, %v168
  %v170 = vpop.f32.mrb[0].mxu0
  %171 = vmatprep.mubr.bf16.mxu0 0
  %172 = vmatmul.mubr.bf16.gmra.mrb[0].mxu0 %v119
  %v173 = vpop.f32.mrb[0].mxu0
  %v174 = vadd.f32 %v92, %v173
  %v175 = vpop.f32.mrb[0].mxu0
  %v176 = vpop.f32.mrb[0].mxu0
  %v177 = vadd.f32 %v97, %v176
  %v178 = vpop.f32.mrb[0].mxu0
  %179 = vmatprep.mubr.bf16.mxu0 0
  %180 = vmatmul.mubr.bf16.gmra.mrb[0].mxu0 %v122
  %v181 = vpop.f32.mrb[0].mxu0
  %v182 = vadd.f32 %v102, %v181
  %v183 = vpop.f32.mrb[0].mxu0
  %v184 = vpop.f32.mrb[0].mxu0
  %v185 = vadd.f32 %v107, %v184
  %v186 = vpop.f32.mrb[0].mxu0
  %187 = vmatprep.mubr.bf16.mxu0 0
  %188 = vmatmul.mubr.bf16.gmra.mrb[0].mxu0 %v125
  %v189 = vpop.f32.mrb[0].mxu0
  %v190 = vadd.f32 %v112, %v189
  %v191 = vpop.f32.mrb[0].mxu0
  %v192 = vpop.f32.mrb[0].mxu0
  %v193 = vpop.f32.mrb[0].mxu0
  %194 = vdwg.mxu0
  %v195 = vmax.f32 %v166, 0.0
  %v196 = vmax.f32 %v169, 0.0
  %v197 = vmax.f32 %v174, 0.0
  %v198 = vmax.f32 %v177, 0.0
  %v199 = vmax.f32 %v182, 0.0
  %v200 = vmax.f32 %v185, 0.0
  %v201 = vmax.f32 %v190, 0.0
  %v202 = vpack.c.bf16 %v196, %v195
  %v203 = vpack.c.bf16 %v198, %v197
  %v204 = vpack.c.bf16 %v200, %v199
  %v205 = vpack.c.bf16 %v201, %v201
  %vm206 = vcmask 408576
  %v208 = vsel %vm206, %v42, 0
  %vm210 = vcmask 1040384
  %v212 = vsel %vm210, %v205, 0
  %214 = vmatprep.subr.bf16.mxu0 0
  %215 = vmatpush1.bf16.msra.mxu0 %v202
  %216 = vmatprep.subr.bf16.mxu0 0
  %217 = vmatpush1.bf16.msra.mxu0 %v203
  %218 = vmatprep.subr.bf16.mxu0 0
  %219 = vmatpush1.bf16.msra.mxu0 %v204
  %220 = vmatprep.subr.bf16.mxu0 0
  %221 = vmatpush1.bf16.msra.mxu0 %v212
  %222 = vmatprep.subr.bf16.mxu0 0
  %223 = vmatpush1.bf16.msra.mxu0 0
  %224 = vmatprep.subr.bf16.mxu0 0
  %225 = vmatpush1.bf16.msra.mxu0 0
  %226 = vmatprep.subr.bf16.mxu0 0
  %227 = vmatpush1.bf16.msra.mxu0 0
  %228 = vmatprep.subr.bf16.mxu0 0
  %229 = vmatpush1.bf16.msra.mxu0 0
  %230 = vmatprep.subr.bf16.mxu0 0
  %231 = vmatpush1.bf16.msra.mxu0 0
  %232 = vmatprep.subr.bf16.mxu0 0
  %233 = vmatpush1.bf16.msra.mxu0 0
  %234 = vmatprep.subr.bf16.mxu0 0
  %235 = vmatpush1.bf16.msra.mxu0 0
  %236 = vmatprep.subr.bf16.mxu0 0
  %237 = vmatpush1.bf16.msra.mxu0 0
  %238 = vmatprep.subr.bf16.mxu0 0
  %239 = vmatpush1.bf16.msra.mxu0 0
  %240 = vmatprep.subr.bf16.mxu0 0
  %241 = vmatpush1.bf16.msra.mxu0 0
  %242 = vmatprep.subr.bf16.mxu0 0
  %243 = vmatpush1.bf16.msra.mxu0 0
  %244 = vmatprep.subr.bf16.mxu0 0
  %245 = vmatpush1.bf16.msra.mxu0 0
  %246 = vmatprep.mubr.bf16.mxu0 0
  %247 = vmatmul.mubr.bf16.gmra.mrb[0].mxu0 %v208
  %v248 = vpop.f32.mrb[0].mxu0
  %v249 = vadd.f32 0.0, %v248
  %v250 = vpop.f32.mrb[0].mxu0
  %v251 = vpop.f32.mrb[0].mxu0
  %v252 = vpop.f32.mrb[0].mxu0
  %253 = vdwg.mxu0
  %vm254 = vcmask 1043456
  %v255 = vsel %vm254, %v249, -inf
  %v256 = vrot.slane %v255, 4
  %v257 = vmax.f32 %v255, %v256
  %v258 = vrot.slane %v257, 2
  %v259 = vmax.f32 %v257, %v258
  %v260 = vrot.slane %v259, 1
  %v261 = vmax.f32 %v259, %v260
  %v262 = vsub.f32 %v249, %v261
  %v263 = vmul.f32 %v262, 1.442695
  %v264 = vpow.pop %v263
  %v265 = vsel %vm254, %v264, 0.0
  %v266 = vrot.slane %v265, 4
  %v267 = vadd.f32 %v265, %v266
  %v268 = vrot.slane %v267, 2
  %v269 = vadd.f32 %v267, %v268
  %v270 = vrot.slane %v269, 1
  %v271 = vadd.f32 %v269, %v270
  %v272 = vrcp.pop %v271
  %v273 = vmul.f32 %v264, %v272
  %274 = vst [vmem:[%s5] sm:$0xf] %v273
  // Predicated region
  $region22: #{net_forward.1} parent=0 // pred_check
    _
  $region23: #{net_forward.1} parent=0 // pred_check_branch
    %276 = sbr.rel (0) target = $region25
  $region24: #{net_forward.1} parent=0 // pred_region
    _
  $region25: #{net_forward.1} parent=0 // pred_fallthru
    _
  // Predicated region
  $region26: #{net_forward.1} parent=0 // pred_check
    _
  $region27: #{net_forward.1} parent=0 // pred_check_branch
    %278 = sbr.rel (0) target = $region29
  $region28: #{net_forward.1} parent=0 // pred_region
    _
  $region29: #{net_forward.1} parent=0 // pred_fallthru
    _

</llo_original>
